<compile_context>
chip_gen: v7x
topology: tpu7x:2x2x1
jax: 0.10.0
libtpu: 0.0.40
codegen_flags: <defaults>
</compile_context>

<pallas_src>
import math
from functools import partial

import jax
import jax.numpy as jnp
from jax import lax
from jax.experimental import pallas as pl
from jax.experimental.pallas import tpu as pltpu


# ----------------------------------------------------------------------------- #
# Dense (nn.Linear) kernel: y = x @ W_t + b, with W_t = W.T pre-cast to bf16.    #
# ----------------------------------------------------------------------------- #
def _dense_kernel(x_ref, wt_ref, b_ref, o_ref):
    x = x_ref[...].astype(jnp.bfloat16)              # bf16 MXU operand, f32 accumulate
    o_ref[...] = (
        jnp.dot(x, wt_ref[...], preferred_element_type=jnp.float32) + b_ref[...]
    )


def dense(x, w, b, *, row_block=256):
    """x: (M, K) f32; w: (N, K) torch.nn.Linear layout; b: (N,) -> (M, N) f32."""
    M, K = x.shape
    N = w.shape[0]
    TM = min(row_block, M)
    wt = w.T.astype(jnp.bfloat16)                    # one-time transpose+cast in XLA
    return pl.pallas_call(
        _dense_kernel,
        out_shape=jax.ShapeDtypeStruct((M, N), jnp.float32),
        grid=(pl.cdiv(M, TM),),
        in_specs=[
            pl.BlockSpec((TM, K), lambda i: (i, 0)),
            pl.BlockSpec((K, N), lambda i: (0, 0)),
            pl.BlockSpec((1, N), lambda i: (0, 0)),
        ],
        out_specs=pl.BlockSpec((TM, N), lambda i: (i, 0)),
        compiler_params=pltpu.CompilerParams(dimension_semantics=("parallel",)),
    )(x, wt, b.reshape(1, N))


# ----------------------------------------------------------------------------- #
# Relative-attention + fusion kernel: one program per (batch, head, q-block).     #
# ----------------------------------------------------------------------------- #
def _row_repeat(x, rep):
    """(M, N) -> (M*rep, N); each row repeated `rep` times (sublane expand)."""
    m, n = x.shape
    return jnp.broadcast_to(x[:, None, :], (m, rep, n)).reshape(m * rep, n)


def _rel_att_fusion_kernel(w_ref, q_ref, k_ref, v_ref, qs_ref, ks_ref, e_ref,
                           out_ref, *score_refs, ds, seq_len, dim_scale):
    TQ = q_ref.shape[0]
    S = seq_len
    inv_scale = 1.0 / dim_scale
    inv_ds = 1.0 / ds
    w = w_ref[0, 0]                                   # fusion scalar from SMEM

    # per-row left-shift amount for relative_shift: shift_i = S - 1 - i (global i)
    q0 = pl.program_id(2) * TQ
    row = lax.broadcasted_iota(jnp.int32, (TQ, 1), 0)
    shift = jnp.maximum((S - 1 - q0) - row, 0)        # clamp pad rows of ragged block
    nbits = max(1, (S - 1).bit_length())
    bit_masks = [(shift & (1 << b)) != 0 for b in range(nbits)]

    q = q_ref[...].astype(jnp.bfloat16)               # (TQ, D)
    k = k_ref[...].astype(jnp.bfloat16)               # (S,  D)
    v = v_ref[...].astype(jnp.bfloat16)               # (S,  D)
    e = e_ref[...].astype(jnp.bfloat16)               # (R_pad, D), zero-padded tail
    dn = (((1,), (1,)), ((), ()))                     # contract last dims: a @ b.T

    # -------- content score --------
    content = lax.dot_general(q, k, dn, preferred_element_type=jnp.float32)     # (TQ, S)

    # -------- positional score + relative_shift (binary conditional shift) --------
    x = lax.dot_general(q, e, dn, preferred_element_type=jnp.float32)           # (TQ, R_pad)
    for b in range(nbits):
        amt = 1 << b
        x = jnp.where(bit_masks[b], x[:, amt:], x[:, : x.shape[1] - amt])
    pos = x[:, :S]

    # -------- downsampled content score (fusion branch) --------
    qs = qs_ref[...].astype(jnp.bfloat16)             # (TQ/ds, D)
    ks = ks_ref[...].astype(jnp.bfloat16)             # (S_sub, D)
    k_rep = _row_repeat(ks, ds)[:S]                   # (S, D) nearest-neighbour expand
    cs_half = lax.dot_general(qs, k_rep, dn,
                              preferred_element_type=jnp.float32) * inv_ds      # (TQ/ds, S)
    cs_up = _row_repeat(cs_half, ds)[:TQ]             # (TQ, S)

    # -------- fuse, softmax (EUP reciprocal), weighted sum --------
    score = (content + w * cs_up + pos) * inv_scale
    m = jnp.max(score, axis=-1, keepdims=True)
    p = jnp.exp(score - m)
    attn = p * pl.reciprocal(jnp.sum(p, axis=-1, keepdims=True), approx=True)
    # TODO(synk): dropout omitted (module default p=0.0 -> identity).

    out_ref[...] = jnp.dot(attn.astype(jnp.bfloat16), v,
                           preferred_element_type=jnp.float32)                  # (TQ, D)

    if score_refs:
        attn_ref, cs_ref, ps_ref = score_refs
        attn_ref[...] = attn.astype(attn_ref.dtype)
        cs_ref[...] = content.astype(cs_ref.dtype)
        ps_ref[...] = pos.astype(ps_ref.dtype)


def rel_att_fusion_core(q, k, v, q_sub, k_sub, rel_pos_emb, w_scalar, *,
                        ds, dim_scale, q_block=128, return_scores=True,
                        score_dtype=jnp.float32):
    """q/k/v: (B, H, S, D); q_sub/k_sub: (B, H, ceil(S/ds), D); rel_pos_emb: (2S-1, D)."""
    B, H, S, D = q.shape
    S_sub = q_sub.shape[2]
    R = rel_pos_emb.shape[0]

    TQ = min(q_block, S)
    assert TQ % ds == 0, "query block must be a multiple of att_ds"
    TQS = TQ // ds
    n_q = pl.cdiv(S, TQ)

    # Pad the relative-position table so the conditional-shift rounds can shrink the
    # tile unconditionally (padded columns are never selected into the first S cols).
    nbits = max(1, (S - 1).bit_length())
    r_pad = S + (1 << nbits) - 1
    e_pad = rel_pos_emb if r_pad <= R else jnp.pad(rel_pos_emb, ((0, r_pad - R), (0, 0)))

    kernel = partial(_rel_att_fusion_kernel, ds=ds, seq_len=S, dim_scale=dim_scale)

    qblk = pl.BlockSpec((None, None, TQ, D), lambda b, h, i: (b, h, i, 0))
    kvblk = pl.BlockSpec((None, None, S, D), lambda b, h, i: (b, h, 0, 0))
    qsblk = pl.BlockSpec((None, None, TQS, D), lambda b, h, i: (b, h, i, 0))
    ksblk = pl.BlockSpec((None, None, S_sub, D), lambda b, h, i: (b, h, 0, 0))
    eblk = pl.BlockSpec((e_pad.shape[0], D), lambda b, h, i: (0, 0))
    wblk = pl.BlockSpec(memory_space=pltpu.MemorySpace.SMEM)
    sblk = pl.BlockSpec((None, None, TQ, S), lambda b, h, i: (b, h, i, 0))

    out_shapes = [jax.ShapeDtypeStruct((B, H, S, D), jnp.float32)]
    out_specs = [qblk]
    if return_scores:
        out_shapes += [jax.ShapeDtypeStruct((B, H, S, S), score_dtype)] * 3
        out_specs += [sblk] * 3

    results = pl.pallas_call(
        kernel,
        out_shape=tuple(out_shapes),
        grid=(B, H, n_q),
        in_specs=[wblk, qblk, kvblk, kvblk, qsblk, ksblk, eblk],
        out_specs=tuple(out_specs),
        compiler_params=pltpu.CompilerParams(
            dimension_semantics=("parallel", "parallel", "parallel"),
            vmem_limit_bytes=48 * 1024 * 1024),
    )(jnp.asarray(w_scalar, jnp.float32).reshape(1, 1),
      q, k, v, q_sub, k_sub, e_pad)

    if return_scores:
        return results
    return results[0], None, None, None


# ----------------------------------------------------------------------------- #
# Parameters + full forward (cheap glue in plain JAX)                             #
# ----------------------------------------------------------------------------- #
def init_params(rng, d_model, heads):
    d_head = d_model // heads
    ks = jax.random.split(rng, 16)

    def linear(kw, kb, out_f, in_f):
        bound = 1.0 / math.sqrt(in_f)
        w = jax.random.uniform(kw, (out_f, in_f), jnp.float32, -bound, bound)
        b = jax.random.uniform(kb, (out_f,), jnp.float32, -bound, bound)
        return w, b

    return {
        "qry": linear(ks[0], ks[1], d_model, d_model),
        "key": linear(ks[2], ks[3], d_model, d_model),
        "val": linear(ks[4], ks[5], d_model, d_model),
        "out": linear(ks[6], ks[7], d_model, d_model),
        "pos": linear(ks[8], ks[9], d_head, d_head),
        # depthwise Conv1d(k=1): weight (d_head,1,1) -> (d_head,), bias (d_head,)
        "q_ds_w": jax.random.uniform(ks[10], (d_head,), jnp.float32, -1.0, 1.0),
        "q_ds_b": jax.random.uniform(ks[11], (d_head,), jnp.float32, -1.0, 1.0),
        "k_ds_w": jax.random.uniform(ks[12], (d_head,), jnp.float32, -1.0, 1.0),
        "k_ds_b": jax.random.uniform(ks[13], (d_head,), jnp.float32, -1.0, 1.0),
        "w": jnp.float32(0.5),
    }


def rel_att_fusion_forward(params, query, key, value, pos_emb, *, heads, ds,
                           return_scores=True):
    # TODO(synk): assumes pos_emb has exactly 2*seq_len-1 rows (the replicate-pad
    # branch of relative_shift is not exercised by the module's documented usage).
    B, S, d_model = query.shape
    d_head = d_model // heads
    dim_scale = math.sqrt(d_model)

    def proj(x, wb):
        w, b = wb
        y = dense(x.reshape(-1, x.shape[-1]), w, b)
        return y.reshape(B, S, heads, d_head).transpose(0, 2, 1, 3)   # (B, H, S, D)

    q = proj(query, params["qry"])
    k = proj(key, params["key"])
    v = proj(value, params["val"])
    e = dense(pos_emb, *params["pos"])                                # (2S-1, d_head)

    # Depthwise k=1 strided conv == per-channel scale+bias on every ds-th row.
    q_sub = q[:, :, ::ds, :] * params["q_ds_w"] + params["q_ds_b"]    # (B,H,ceil(S/ds),D)
    k_sub = k[:, :, ::ds, :] * params["k_ds_w"] + params["k_ds_b"]

    out, attn, content_score, pos_score = rel_att_fusion_core(
        q, k, v, q_sub, k_sub, e, params["w"],
        ds=ds, dim_scale=dim_scale, return_scores=return_scores)

    out = out.transpose(0, 2, 1, 3).reshape(B, S, d_model)            # (B, S, H*D)
    ow, ob = params["out"]
    out = dense(out.reshape(B * S, d_model), ow, ob).reshape(B, S, d_model)
    return out, attn, content_score, pos_score


# ----------------------------------------------------------------------------- #
# Plain-JAX f32 reference (mirrors the PyTorch module) for a numeric cross-check  #
# ----------------------------------------------------------------------------- #
def _relative_shift_ref(score):
    B, H, S, _ = score.shape
    score = jnp.pad(score, ((0, 0), (0, 0), (0, 0), (1, 0)))
    score = score.reshape(B, H, -1)
    score = score[..., S:].reshape(B, H, S, -1)
    return score[..., :S]


def _forward_ref(params, query, key, value, pos_emb, *, heads, ds):
    B, S, d_model = query.shape
    d_head = d_model // heads

    def lin(x, wb):
        w, b = wb
        return x @ w.T + b

    q = lin(query, params["qry"]).reshape(B, S, heads, d_head).transpose(0, 2, 1, 3)
    k = lin(key, params["key"]).reshape(B, S, heads, d_head).transpose(0, 2, 1, 3)
    v = lin(value, params["val"]).reshape(B, S, heads, d_head).transpose(0, 2, 1, 3)
    e = lin(pos_emb, params["pos"])

    pos = _relative_shift_ref(jnp.einsum('bhsd,rd->bhsr', q, e))
    q_sub = q[:, :, ::ds, :] * params["q_ds_w"] + params["q_ds_b"]
    k_sub = k[:, :, ::ds, :] * params["k_ds_w"] + params["k_ds_b"]
    cs_ds = jnp.einsum('bhtd,bhud->bhtu', q_sub, k_sub) / ds
    cs_ds = jnp.repeat(cs_ds, ds, axis=3)[:, :, :, :S]
    cs_ds = jnp.repeat(cs_ds, ds, axis=2)[:, :, :S, :]
    content = jnp.einsum('bhsd,bhtd->bhst', q, k)
    score = (content + params["w"] * cs_ds + pos) / math.sqrt(d_model)
    attn = jax.nn.softmax(score, axis=-1)
    out = jnp.einsum('bhst,bhtd->bhsd', attn, v).transpose(0, 2, 1, 3).reshape(B, S, d_model)
    out = lin(out, params["out"])
    return out, attn, content, pos


# ----------------------------------------------------------------------------- #
if __name__ == "__main__":
    B, S = 2, 8
    d_model, heads, ds = 64, 4, 2
    d_head = d_model // heads

    root = jax.random.PRNGKey(0)
    kq, kk, kv, kp, kparam = jax.random.split(root, 5)
    query = jax.random.normal(kq, (B, S, d_model), jnp.float32)
    key_in = jax.random.normal(kk, (B, S, d_model), jnp.float32)
    value = jax.random.normal(kv, (B, S, d_model), jnp.float32)
    pos_emb = jax.random.normal(kp, (2 * S - 1, d_head), jnp.float32)
    params = init_params(kparam, d_model, heads)

    out, attn, cs, ps = rel_att_fusion_forward(
        params, query, key_in, value, pos_emb, heads=heads, ds=ds)
    jax.block_until_ready((out, attn, cs, ps))

    # bf16 MXU operands -> compare against the pure-f32 reference with a
    # bf16-appropriate tolerance (structural errors would be O(0.5 - 5)).
    ro, ra, rc, rp = _forward_ref(
        params, query, key_in, value, pos_emb, heads=heads, ds=ds)
    for got, ref in ((out, ro), (attn, ra), (cs, rc), (ps, rp)):
        assert jnp.allclose(got, ref, atol=4e-2, rtol=4e-2), \
            float(jnp.max(jnp.abs(got - ref)))

    print("KERNEL_OK")
</pallas_src>

<mosaic_0001>
module attributes {stable_mosaic.version = 11 : i64} {
  func.func @_dense_kernel(%arg0: i32, %arg1: memref<16x64xf32, #tpu.memory_space<vmem>>, %arg2: memref<64x64xbf16, #tpu.memory_space<vmem>>, %arg3: memref<1x64xf32, #tpu.memory_space<vmem>>, %arg4: memref<16x64xf32, #tpu.memory_space<vmem>>) attributes {dimension_semantics = [#tpu.dimension_semantics<parallel>], iteration_bounds = array<i64: 1>, scalar_prefetch = 0 : i64, scratch_operands = 0 : i64, tpu.core_type = #tpu.core_type<tc>, window_params = [{transform_indices = @transform_0, window_bounds = array<i64: 16, 64>}, {pipeline_mode = #tpu.pipeline_mode<synchronous>, transform_indices = @transform_1, window_bounds = array<i64: 64, 64>}, {pipeline_mode = #tpu.pipeline_mode<synchronous>, transform_indices = @transform_2, window_bounds = array<i64: 1, 64>}, {transform_indices = @transform_3, window_bounds = array<i64: 16, 64>}]} {
    %c0 = arith.constant 0 : index
    %c0_0 = arith.constant 0 : index
    %0 = vector.load %arg1[%c0, %c0_0] : memref<16x64xf32, #tpu.memory_space<vmem>>, vector<16x64xf32>
    %1 = arith.truncf %0 : vector<16x64xf32> to vector<16x64xbf16>
    %c0_1 = arith.constant 0 : index
    %c0_2 = arith.constant 0 : index
    %2 = vector.load %arg2[%c0_1, %c0_2] : memref<64x64xbf16, #tpu.memory_space<vmem>>, vector<64x64xbf16>
    %cst = arith.constant dense<0.000000e+00> : vector<16x64xf32>
    %3 = tpu.matmul %1, %2, %cst {dimension_numbers = #tpu.dot_dimension_numbers<[1], [0], [0], [1], [0, 0, 1, 1], [], []>} : vector<16x64xbf16>, vector<64x64xbf16>, vector<16x64xf32> -> vector<16x64xf32>
    %c0_3 = arith.constant 0 : index
    %c0_4 = arith.constant 0 : index
    %4 = vector.load %arg3[%c0_3, %c0_4] : memref<1x64xf32, #tpu.memory_space<vmem>>, vector<1x64xf32>
    %5 = vector.broadcast %4 : vector<1x64xf32> to vector<16x64xf32>
    %6 = arith.addf %3, %5 : vector<16x64xf32>
    %c0_5 = arith.constant 0 : index
    %c0_6 = arith.constant 0 : index
    %7 = vector.load %arg4[%c0_5, %c0_6] : memref<16x64xf32, #tpu.memory_space<vmem>>, vector<16x64xf32>
    tpu.vector_store %arg4[%c0_5, %c0_6], %6 {strides = array<i32>} : memref<16x64xf32, #tpu.memory_space<vmem>>, vector<16x64xf32>,
    return
  }
  func.func @transform_0(%arg0: i32) -> (i32, i32) {
    %c0_i32 = arith.constant 0 : i32
    %c0_i32_0 = arith.constant 0 : i32
    return %arg0, %c0_i32 : i32, i32
  }
  func.func @transform_1(%arg0: i32) -> (i32, i32) {
    %c0_i32 = arith.constant 0 : i32
    %c0_i32_0 = arith.constant 0 : i32
    %c0_i32_1 = arith.constant 0 : i32
    return %c0_i32, %c0_i32_0 : i32, i32
  }
  func.func @transform_2(%arg0: i32) -> (i32, i32) {
    %c0_i32 = arith.constant 0 : i32
    %c0_i32_0 = arith.constant 0 : i32
    %c0_i32_1 = arith.constant 0 : i32
    return %c0_i32, %c0_i32_0 : i32, i32
  }
  func.func @transform_3(%arg0: i32) -> (i32, i32) {
    %c0_i32 = arith.constant 0 : i32
    %c0_i32_0 = arith.constant 0 : i32
    return %arg0, %c0_i32 : i32, i32
  }
}

</mosaic_0001>

<llo_original>
// kernel: tpu_custom_call.1
$region0: #{tpu_custom_call.1}
  #allocation0 [shape = 'u32[]', space=smem, size = 0x4, offset = 0x4, fixed_abs, tag = 'smem constant byte address 0x4 - core index']
  #allocation1 [shape = 'u32[144,128]{1,0:T(1,128)}', space=vmem, size = 0x12000, scoped, tag = 'internal scratch']
  %s0 = inlined_call_operand.hbm [shape: f32[16,64], index: 0, kind: input, shape index: {}]
  %s1 = inlined_call_operand.hbm [shape: bf16[64,64], index: 1, kind: input, shape index: {}]
  %s2 = inlined_call_operand.vmem [shape: f32[1,64], index: 2, kind: input, shape index: {}]
  %s3 = inlined_call_operand.hbm [shape: f32[16,64], index: 3, kind: output, shape index: {}]
  %s4 = sld [smem:[#allocation0]]
  $region30: #{tpu_custom_call.1} parent=0
    _
  %s6 = ssub.s32 1, %s4
  %s7 = scalar_select 0, %s6, %s4
  $region1: #{tpu_custom_call.1} parent=0
    #allocation2 [shape = 'u8[8192]{0}', space=vmem, size = 0x2000, scoped, tag = 'input window, operand 0, single buffered']
    #allocation3 [shape = 's32[1]{0}', space=sflag, size = 0x4, scoped, tag = 'scoped memory for tpu_custom_call.1']
    #allocation4 [shape = 's32[1]{0}', space=sflag, size = 0x4, scoped, tag = 'scoped memory for tpu_custom_call.1']
    #allocation5 [shape = 'u8[16384]{0}', space=vmem, size = 0x4000, scoped, tag = 'input window, operand 1, single buffered']
    #allocation6 [shape = 's32[1]{0}', space=sflag, size = 0x4, scoped, tag = 'scoped memory for tpu_custom_call.1']
    #allocation7 [shape = 'u8[8192]{0}', space=vmem, size = 0x2000, scoped, tag = 'output window, operand 0, single buffered']
    %8 = vsyncpa [#allocation3], 0
    %9 = vsyncpa [#allocation6], 0
    %10 = vsyncpa [#allocation4], 0
    // Predicated region
    $region2: #{tpu_custom_call.1} parent=1 // pred_check
      _
    $region3: #{tpu_custom_call.1} parent=1 // pred_check_branch
      %12 = sbr.rel (0) target = $region5
    $region4: #{tpu_custom_call.1} parent=1 // pred_region
      %s14 = ssub.s32 256, 256
      %15 = vsyncadd [#allocation3], %s14
      %s16 = sshll.u32 [#allocation2], 4
      %s17 = int_to_ptr.vmem [resolvable:$true] %s16
      %22 = dma.hbm_to_vmem [thread:$0]  %s0, 256, %s17, [#allocation3], 128, 128, 8
    $region5: #{tpu_custom_call.1} parent=1 // pred_fallthru
      _
    // Predicated region
    $region6: #{tpu_custom_call.1} parent=1 // pred_check
      _
    $region7: #{tpu_custom_call.1} parent=1 // pred_check_branch
      %24 = sbr.rel (0) target = $region9
    $region8: #{tpu_custom_call.1} parent=1 // pred_region
      %s26 = ssub.s32 512, 512
      %27 = vsyncadd [#allocation6], %s26
      %s28 = sshll.u32 [#allocation5], 4
      %s29 = int_to_ptr.vmem [resolvable:$true] %s28
      %34 = dma.hbm_to_vmem [thread:$0]  %s1, 512, %s29, [#allocation6], 64, 64, 4
    $region9: #{tpu_custom_call.1} parent=1 // pred_fallthru
      _
    // Predicated region
    $region10: #{tpu_custom_call.1} parent=1 // pred_check
      _
    $region11: #{tpu_custom_call.1} parent=1 // pred_check_branch
      %36 = sbr.rel (0) target = $region13
    $region12: #{tpu_custom_call.1} parent=1 // pred_region
      _
    $region13: #{tpu_custom_call.1} parent=1 // pred_fallthru
      _
    // Predicated region
    $region14: #{tpu_custom_call.1} parent=1 // pred_check
      _
    $region15: #{tpu_custom_call.1} parent=1 // pred_check_branch
      %38 = sbr.rel (0) target = $region17
    $region16: #{tpu_custom_call.1} parent=1 // pred_region
      %39 = dma.done [#allocation3], 256
    $region17: #{tpu_custom_call.1} parent=1 // pred_fallthru
      _
    // Predicated region
    $region18: #{tpu_custom_call.1} parent=1 // pred_check
      _
    $region19: #{tpu_custom_call.1} parent=1 // pred_check_branch
      %41 = sbr.rel (0) target = $region21
    $region20: #{tpu_custom_call.1} parent=1 // pred_region
      %42 = dma.done [#allocation6], 512
    $region21: #{tpu_custom_call.1} parent=1 // pred_fallthru
      _
    %v44 = vld [vmem:[#allocation2] sm:$0xff]
    %v45 = vld [vmem:[#allocation2 + $0x8] sm:$0xff]
    %v46 = vpack.c.bf16 %v45, %v44
    %v47 = vld [vmem:[#allocation5] sm:$0xf]
    %v48 = vld [vmem:[#allocation5 + $0x4] sm:$0xf]
    %v49 = vld [vmem:[#allocation5 + $0x8] sm:$0xf]
    %v50 = vld [vmem:[#allocation5 + $0xc] sm:$0xf]
    %v51 = vld [vmem:[#allocation5 + $0x10] sm:$0xf]
    %v52 = vld [vmem:[#allocation5 + $0x14] sm:$0xf]
    %v53 = vld [vmem:[#allocation5 + $0x18] sm:$0xf]
    %v54 = vld [vmem:[#allocation5 + $0x1c] sm:$0xf]
    %v55 = vld [vmem:[%s2] sm:$0x1]
    %v57 = vlaneseq
    %v58 = vshrl.u32 %v57, 7
    %v59 = vsub.s32 0, %v58
    %v60 = vrot.slane %v55, %v59
    %v70 = vunpack.c.l.b16 %v47
    %v71 = vunpack.c.l.b16 %v48
    %v72 = vunpack.c.l.b16 %v49
    %v73 = vunpack.c.l.b16 %v50
    %v74 = vunpack.c.l.b16 %v51
    %v75 = vunpack.c.l.b16 %v52
    %v76 = vunpack.c.l.b16 %v53
    %v77 = vunpack.c.l.b16 %v54
    %v78 = vpack.c.b16 %v71, %v70
    %v79 = vpack.c.b16 %v73, %v72
    %v80 = vpack.c.b16 %v75, %v74
    %v81 = vpack.c.b16 %v77, %v76
    %vm86 = vcmask 523264
    %v88 = vsel %vm86, %v46, 0
    %90 = vmatprep.subr.bf16.mxu0 0
    %91 = vmatpush1.bf16.msra.mxu0 %v78
    %92 = vmatprep.subr.bf16.mxu0 0
    %93 = vmatpush1.bf16.msra.mxu0 %v79
    %94 = vmatprep.subr.bf16.mxu0 0
    %95 = vmatpush1.bf16.msra.mxu0 %v80
    %96 = vmatprep.subr.bf16.mxu0 0
    %97 = vmatpush1.bf16.msra.mxu0 %v81
    %98 = vmatprep.subr.bf16.mxu0 0
    %99 = vmatpush1.bf16.msra.mxu0 0
    %100 = vmatprep.subr.bf16.mxu0 0
    %101 = vmatpush1.bf16.msra.mxu0 0
    %102 = vmatprep.subr.bf16.mxu0 0
    %103 = vmatpush1.bf16.msra.mxu0 0
    %104 = vmatprep.subr.bf16.mxu0 0
    %105 = vmatpush1.bf16.msra.mxu0 0
    %106 = vmatprep.subr.bf16.mxu0 0
    %107 = vmatpush1.bf16.msra.mxu0 0
    %108 = vmatprep.subr.bf16.mxu0 0
    %109 = vmatpush1.bf16.msra.mxu0 0
    %110 = vmatprep.subr.bf16.mxu0 0
    %111 = vmatpush1.bf16.msra.mxu0 0
    %112 = vmatprep.subr.bf16.mxu0 0
    %113 = vmatpush1.bf16.msra.mxu0 0
    %114 = vmatprep.subr.bf16.mxu0 0
    %115 = vmatpush1.bf16.msra.mxu0 0
    %116 = vmatprep.subr.bf16.mxu0 0
    %117 = vmatpush1.bf16.msra.mxu0 0
    %118 = vmatprep.subr.bf16.mxu0 0
    %119 = vmatpush1.bf16.msra.mxu0 0
    %120 = vmatprep.subr.bf16.mxu0 0
    %121 = vmatpush1.bf16.msra.mxu0 0
    %122 = vmatprep.mubr.bf16.mxu0 0
    %123 = vmatmul.mubr.bf16.gmra.mrb[0].mxu0 %v88
    %v124 = vpop.f32.mrb[0].mxu0
    %v125 = vadd.f32 %v60, %v124
    %v126 = vpop.f32.mrb[0].mxu0
    %v127 = vpop.f32.mrb[0].mxu0
    %v128 = vadd.f32 %v60, %v127
    %v129 = vpop.f32.mrb[0].mxu0
    %130 = vdwg.mxu0
    %131 = vst.msk [vmem:[#allocation7] sm:$0xff] %vm86, %v125
    %132 = vst.msk [vmem:[#allocation7 + $0x8] sm:$0xff] %vm86, %v128
    // Predicated region
    $region22: #{tpu_custom_call.1} parent=1 // pred_check
      _
    $region23: #{tpu_custom_call.1} parent=1 // pred_check_branch
      %134 = sbr.rel (0) target = $region25
    $region24: #{tpu_custom_call.1} parent=1 // pred_region
      %s136 = ssub.s32 256, 256
      %137 = vsyncadd [#allocation4], %s136
      %s138 = sshll.u32 [#allocation7], 4
      %s139 = int_to_ptr.vmem [resolvable:$true] %s138
      %144 = dma.vmem_to_hbm [thread:$0]  %s139, 256, %s3, [#allocation4], 128, 128, 8
    $region25: #{tpu_custom_call.1} parent=1 // pred_fallthru
      _
    // Predicated region
    $region26: #{tpu_custom_call.1} parent=1 // pred_check
      _
    $region27: #{tpu_custom_call.1} parent=1 // pred_check_branch
      %146 = sbr.rel (0) target = $region29
    $region28: #{tpu_custom_call.1} parent=1 // pred_region
      %147 = dma.done [#allocation4], 256
    $region29: #{tpu_custom_call.1} parent=1 // pred_fallthru
      _
    %148 = vsyncpa [#allocation3], 1
    %149 = vsyncpa [#allocation6], 1
    %150 = vsyncpa [#allocation4], 1

</llo_original>
